<compile_context>
chip_gen: v5e
topology: v5e:2x2
jax: 0.10.0
libtpu: 0.0.40
codegen_flags: <defaults>
</compile_context>

<pallas_src>
import math

import numpy as np
import jax
import jax.numpy as jnp
from jax.experimental import pallas as pl
from jax.experimental.pallas import tpu as pltpu


_TARGET_BLOCK_BYTES = 2 * 1024 * 1024   # ~2 MiB x-blocks: (in+out) x 2 buffers = 8 MiB


def _round_down(v, m):
    return (v // m) * m


def _round_up(v, m):
    return ((v + m - 1) // m) * m


def _choose_tiles(R, L, itemsize, target_bytes):
    """Pick (r_tile, c_tile) for an (R, L) elementwise streaming kernel."""
    if L <= 128 or 8 * L * itemsize <= target_bytes:
        c_tile = L                                          # full-width rows
    else:
        c_tile = _round_down(target_bytes // (8 * itemsize), 128)
        c_tile = max(128, min(c_tile, _round_down(L, 128)))
    rows_budget = max(8, target_bytes // (c_tile * itemsize))
    if R <= rows_budget:
        r_tile = R                                          # full dim -> always legal
    else:
        r_tile = max(8, _round_down(rows_budget, 8))
    return r_tile, c_tile


def _ensure_multiple_blocks(R, L, r_tile, c_tile):
    """Split a 1-block grid so v7x's second TensorCore has work."""
    if pl.cdiv(R, r_tile) * pl.cdiv(L, c_tile) >= 2:
        return r_tile, c_tile
    if L >= 256:
        new_c = max(128, _round_up(pl.cdiv(L, 2), 128))
        if new_c < L:
            return r_tile, new_c
    if R >= 16:
        new_r = max(8, _round_up(pl.cdiv(R, 2), 8))
        if new_r < R:
            return new_r, c_tile
    return r_tile, c_tile


def _channel_scale_kernel(scale_ref, x_ref, o_ref):
    # scale_ref broadcasts against x_ref: (r_tile, 1) or (1, c_tile), float32.
    s = scale_ref[...].astype(x_ref.dtype)
    xm = x_ref[...] * s          # x = x * mask
    o_ref[...] = xm * s          # return x * mask   (mask applied twice)


def channel_scaling_forward(x, channels, factor,
                            target_block_bytes=_TARGET_BLOCK_BYTES):
    """JAX/Pallas equivalent of ChannelScalingLayer.forward.

    x: (N, C, H, W).  channels: static python list of channel indices.
    factor: static scalar; selected channels are multiplied by `factor` twice
    (others by 1.0 twice), exactly like the PyTorch module.
    """
    if len(channels) == 0:
        return x

    N, C, H, W = x.shape
    ch = sorted({int(c) for c in channels})
    for c in ch:
        if c < 0 or c >= C:
            raise ValueError(f"channel index {c} out of range for C={C}")

    HW = H * W
    itemsize = jnp.dtype(x.dtype).itemsize

    # Per-channel scale built with numpy at trace time (channels/factor are
    # static python values) -> constant-foldable, no per-call device scatter.
    scale_c = np.ones((C,), dtype=np.float32)
    scale_c[np.asarray(ch, dtype=np.int64)] = np.float32(factor)

    # Lane-dense 2D view (zero-copy for contiguous NCHW).
    lane_major = HW >= 128
    if lane_major:
        R, L = N * C, HW          # per-row scale
    else:
        R, L = N, C * HW          # per-lane scale (small feature maps)
    x2 = x.reshape(R, L)

    r_tile, c_tile = _choose_tiles(R, L, itemsize, target_block_bytes)
    r_tile, c_tile = _ensure_multiple_blocks(R, L, r_tile, c_tile)

    if lane_major and r_tile < R and r_tile % C != 0:
        # Try to make every row block see the same per-row pattern
        # (r_tile % C == 0) so the scale becomes a single resident block.
        g = (8 * C) // math.gcd(8, C)                      # lcm(8, C)
        if g <= r_tile and g * c_tile * itemsize <= target_block_bytes:
            r_tile = _round_down(r_tile, g)

    if lane_major:
        if r_tile % C == 0:
            # Pattern identical for every row block -> small resident block,
            # fetched once (constant index_map), no per-step DMA.
            pat = np.tile(scale_c, r_tile // C).reshape(r_tile, 1)
            scale_arr = jnp.asarray(pat)
            scale_spec = pl.BlockSpec((r_tile, 1), lambda i, j: (0, 0))
        else:
            # Streamed once per row block; tiny in this (large-HW) regime.
            full = np.tile(scale_c, N).reshape(R, 1)
            scale_arr = jnp.asarray(full)
            scale_spec = pl.BlockSpec((r_tile, 1), lambda i, j: (i, 0))
    else:
        # Lane-dense per-column scale row, broadcast along sublanes for free.
        row = np.repeat(scale_c, HW).reshape(1, L)
        scale_arr = jnp.asarray(row)
        scale_spec = pl.BlockSpec((1, c_tile), lambda i, j: (0, j))

    grid = (pl.cdiv(R, r_tile), pl.cdiv(L, c_tile))
    x_spec = pl.BlockSpec((r_tile, c_tile), lambda i, j: (i, j))

    out2 = pl.pallas_call(
        _channel_scale_kernel,
        out_shape=jax.ShapeDtypeStruct((R, L), x.dtype),
        grid=grid,
        in_specs=[scale_spec, x_spec],
        out_specs=pl.BlockSpec((r_tile, c_tile), lambda i, j: (i, j)),
        compiler_params=pltpu.CompilerParams(
            dimension_semantics=("parallel", "parallel")),
        # x2 is operand 1; donate its buffer to the output (XLA inserts a copy
        # if x is still live elsewhere, so this is always safe).
        input_output_aliases={1: 0},
        cost_estimate=pl.CostEstimate(
            flops=2 * R * L,
            transcendentals=0,
            bytes_accessed=2 * R * L * itemsize + scale_arr.size * 4),
    )(scale_arr, x2)

    return out2.reshape(N, C, H, W)


if __name__ == "__main__":
    key = jax.random.PRNGKey(0)
    N, C, H, W = 2, 4, 16, 16
    x = jax.random.normal(key, (N, C, H, W), dtype=jnp.float32)

    channels = [1, 3]     # channels to scale
    factor = 0.5

    out = channel_scaling_forward(x, channels, factor)
    out = jax.block_until_ready(out)

    # Reference check (pure JAX): mask applied twice, exactly like the module.
    mask = jnp.ones((N, C, H, W), dtype=x.dtype)
    mask = mask.at[:, jnp.asarray(channels)].set(jnp.asarray(factor, x.dtype))
    ref = (x * mask) * mask
    assert out.shape == x.shape and out.dtype == x.dtype
    assert jnp.allclose(out, ref, atol=1e-6), "mismatch vs reference"

    print("KERNEL_OK")
</pallas_src>

<mosaic_0001>
module attributes {stable_mosaic.version = 11 : i64} {
  func.func @_channel_scale_kernel(%arg0: i32, %arg1: i32, %arg2: memref<8x1xf32, #tpu.memory_space<vmem>>, %arg3: memref<8x128xf32, #tpu.memory_space<vmem>>, %arg4: memref<8x128xf32, #tpu.memory_space<vmem>>) attributes {dimension_semantics = [#tpu.dimension_semantics<parallel>, #tpu.dimension_semantics<parallel>], iteration_bounds = array<i64: 1, 2>, scalar_prefetch = 0 : i64, scratch_operands = 0 : i64, tpu.core_type = #tpu.core_type<tc>, window_params = [{pipeline_mode = #tpu.pipeline_mode<synchronous>, transform_indices = @transform_0, window_bounds = array<i64: 8, 1>}, {transform_indices = @transform_1, window_bounds = array<i64: 8, 128>}, {transform_indices = @transform_2, window_bounds = array<i64: 8, 128>}]} {
    %c0 = arith.constant 0 : index
    %c0_0 = arith.constant 0 : index
    %0 = vector.load %arg2[%c0, %c0_0] : memref<8x1xf32, #tpu.memory_space<vmem>>, vector<8x1xf32>
    %c0_1 = arith.constant 0 : index
    %c0_2 = arith.constant 0 : index
    %1 = vector.load %arg3[%c0_1, %c0_2] : memref<8x128xf32, #tpu.memory_space<vmem>>, vector<8x128xf32>
    %2 = vector.broadcast %0 : vector<8x1xf32> to vector<8x128xf32>
    %3 = arith.mulf %1, %2 : vector<8x128xf32>
    %4 = vector.broadcast %0 : vector<8x1xf32> to vector<8x128xf32>
    %5 = arith.mulf %3, %4 : vector<8x128xf32>
    %c0_3 = arith.constant 0 : index
    %c0_4 = arith.constant 0 : index
    %6 = vector.load %arg4[%c0_3, %c0_4] : memref<8x128xf32, #tpu.memory_space<vmem>>, vector<8x128xf32>
    tpu.vector_store %arg4[%c0_3, %c0_4], %5 {strides = array<i32>} : memref<8x128xf32, #tpu.memory_space<vmem>>, vector<8x128xf32>,
    return
  }
  func.func @transform_0(%arg0: i32, %arg1: i32) -> (i32, i32) {
    %c0_i32 = arith.constant 0 : i32
    %c0_i32_0 = arith.constant 0 : i32
    %c0_i32_1 = arith.constant 0 : i32
    return %c0_i32, %c0_i32_0 : i32, i32
  }
  func.func @transform_1(%arg0: i32, %arg1: i32) -> (i32, i32) {
    %c0_i32 = arith.constant 0 : i32
    return %arg0, %arg1 : i32, i32
  }
  func.func @transform_2(%arg0: i32, %arg1: i32) -> (i32, i32) {
    %c0_i32 = arith.constant 0 : i32
    return %arg0, %arg1 : i32, i32
  }
}

</mosaic_0001>

<llo_original>
// kernel: tpu_custom_call.1
$region0: #{tpu_custom_call.1}
  #allocation0 [shape = 'u32[]', space=smem, size = 0x4, offset = 0x4, fixed_abs, tag = 'smem constant byte address 0x4 - core index']
  #allocation1 [shape = 'u32[72,128]{1,0:T(1,128)}', space=vmem, size = 0x9000, scoped, tag = 'internal scratch']
  %s0 = inlined_call_operand.vmem [shape: f32[8,1], index: 0, kind: input, shape index: {}]
  %s1 = inlined_call_operand.hbm [shape: f32[8,256], index: 1, kind: input, shape index: {}, may-alias: {1,2}]
  %s2 = inlined_call_operand.hbm [shape: f32[8,256], index: 2, kind: output, shape index: {}, may-alias: {1,2}]
  %s3 = sld [smem:[#allocation0]]
  $region45: #{tpu_custom_call.1} parent=0
    _
  %s5 = ssub.s32 1, %s3
  %s6 = scalar_select 0, %s5, %s3
  $region1: #{tpu_custom_call.1} parent=0
    #allocation2 [shape = 'u8[8192]{0}', space=vmem, size = 0x2000, scoped, tag = 'input window, operand 1']
    #allocation3 [shape = 's32[2]{0}', space=sflag, size = 0x8, scoped, tag = 'scoped memory for tpu_custom_call.1']
    #allocation4 [shape = 's32[2]{0}', space=sflag, size = 0x8, scoped, tag = 'scoped memory for tpu_custom_call.1']
    #allocation5 [shape = 'u8[8192]{0}', space=vmem, size = 0x2000, scoped, tag = 'output window, operand 0']
    %7 = vsyncpa [#allocation3], 0
    %s8 = scalar_lea.sflag [#allocation3], 1
    %9 = vsyncpa %s8, 0
    %10 = vsyncpa [#allocation4], 0
    %s11 = scalar_lea.sflag [#allocation4], 1
    %12 = vsyncpa %s11, 0
    loop: start=0, step=1, limit=4
    $region2: #{tpu_custom_call.1} parent=1 // loop_pre_header
      _
    $region3: #{tpu_custom_call.1} parent=1 // loop_header
      %s14 = sphi 0, %s18
      %p15 = scmp.ge.s32.totalorder %s14, 4
      %s21 = sphi 0, %s33
      %s22 = sphi 0, %s29
      %s23 = sphi 0, %s21
      %s24 = sphi 0, %s22
      %s25 = sphi 0, %s23
      %s26 = sphi 0, %s24
      %s34 = sphi 0, %s34
      %s36 = sphi 0, %s34
      %s37 = sphi 0, %s36
      %s51 = sphi 0, %s37
      %s59 = sphi 0, %s61
      %s62 = sphi 0, %s59
      %s63 = sphi 0, %s62
      %s79 = sphi 0, %s63
      %s87 = sphi 0, %s89
      %s90 = sphi 0, %s87
      %s91 = sphi 0, %s90
      %s107 = sphi 0, %s91
    $region4: #{tpu_custom_call.1} parent=1 // loop_header_branch
      %17 = sbr.rel (%p15) target = $region8
    $region5: #{tpu_custom_call.1} parent=1 // loop_body
      %s19 = ssub.s32 %s14, 1
      %s20 = ssub.s32 %s14, 2
      %s27 = sadd.s32 1, %s22
      %p28 = scmp.ge.s32.totalorder %s27, 2
      %s29 = scalar_select %p28, 0, %s27
      %s30 = sadd.s32 1, %s21
      %s31 = scalar_select %p28, %s30, %s21
      %p32 = scmp.ge.s32.totalorder %s31, 1
      %s33 = scalar_select %p32, 0, %s31
      %s35 = sadd.s32 %s34, 1
      %p38 = scmp.eq.s32.totalorder %s14, 1
      %p39 = scmp.ne.s32.totalorder %s34, %s36
      %p40 = scmp.eq.s32.totalorder %s14, 0
      %p41 = por %p39, %p40
      %p42 = scmp.ne.s32.totalorder %s34, %s36
      %p43 = scmp.eq.s32.totalorder %s19, 1
      %p44 = por %p42, %p43
      %p45 = scmp.ne.s32.totalorder %s36, %s37
      %p46 = scmp.eq.s32.totalorder %s19, 0
      %p47 = por %p45, %p46
      %p48 = scmp.ne.s32.totalorder %s36, %s37
      %p49 = scmp.eq.s32.totalorder %s20, 1
      %p50 = por %p48, %p49
      %p52 = scmp.ne.s32.totalorder %s37, %s51
      %p53 = scmp.eq.s32.totalorder %s20, 0
      %p54 = por %p52, %p53
      %s55 = ssub.s32 %s21, %s33
      %s56 = ssub.s32 %s22, %s29
      %s57 = sor.u32 %s55, %s56
      %p58 = scmp.eq.s32.totalorder %s57, 0
      %s60 = sadd.s32 %s59, 1
      %s61 = scalar_select %p58, %s59, %s60
      %p64 = pneg %p58
      %p65 = scmp.eq.s32.totalorder %s14, 1
      %p66 = por %p64, %p65
      %p67 = scmp.ne.s32.totalorder %s59, %s62
      %p68 = scmp.eq.s32.totalorder %s14, 0
      %p69 = por %p67, %p68
      %p70 = scmp.ne.s32.totalorder %s59, %s62
      %p71 = scmp.eq.s32.totalorder %s19, 1
      %p72 = por %p70, %p71
      %p73 = scmp.ne.s32.totalorder %s62, %s63
      %p74 = scmp.eq.s32.totalorder %s19, 0
      %p75 = por %p73, %p74
      %p76 = scmp.ne.s32.totalorder %s62, %s63
      %p77 = scmp.eq.s32.totalorder %s20, 1
      %p78 = por %p76, %p77
      %p80 = scmp.ne.s32.totalorder %s63, %s79
      %p81 = scmp.eq.s32.totalorder %s20, 0
      %p82 = por %p80, %p81
      %s83 = ssub.s32 %s21, %s33
      %s84 = ssub.s32 %s22, %s29
      %s85 = sor.u32 %s83, %s84
      %p86 = scmp.eq.s32.totalorder %s85, 0
      %s88 = sadd.s32 %s87, 1
      %s89 = scalar_select %p86, %s87, %s88
      %p92 = pneg %p86
      %p93 = scmp.eq.s32.totalorder %s14, 1
      %p94 = por %p92, %p93
      %p95 = scmp.ne.s32.totalorder %s87, %s90
      %p96 = scmp.eq.s32.totalorder %s14, 0
      %p97 = por %p95, %p96
      %p98 = scmp.ne.s32.totalorder %s87, %s90
      %p99 = scmp.eq.s32.totalorder %s19, 1
      %p100 = por %p98, %p99
      %p101 = scmp.ne.s32.totalorder %s90, %s91
      %p102 = scmp.eq.s32.totalorder %s19, 0
      %p103 = por %p101, %p102
      %p104 = scmp.ne.s32.totalorder %s90, %s91
      %p105 = scmp.eq.s32.totalorder %s20, 1
      %p106 = por %p104, %p105
      %p108 = scmp.ne.s32.totalorder %s91, %s107
      %p109 = scmp.eq.s32.totalorder %s20, 0
      %p110 = por %p108, %p109
      %p111 = scmp.le.s32.totalorder 1, %s14
      %p112 = scmp.lt.s32.totalorder %s14, 3
      %p113 = pnand %p111, %p112
      %p114 = pneg %p113
      // Predicated region
      $region9: #{tpu_custom_call.1} parent=5 // pred_check
        _
      $region10: #{tpu_custom_call.1} parent=5 // pred_check_branch
        %116 = sbr.rel (%p113) target = $region12
      $region11: #{tpu_custom_call.1} parent=5 // pred_region
        %s117 = ssub.s32 %s14, 1
        // Predicated region
        $region13: #{tpu_custom_call.1} parent=11 // pred_check
          %p118 = pneg %p47
        $region14: #{tpu_custom_call.1} parent=11 // pred_check_branch
          %120 = sbr.rel (%p118) target = $region16
        $region15: #{tpu_custom_call.1} parent=11 // pred_region
          _
        $region16: #{tpu_custom_call.1} parent=11 // pred_fallthru
          _
      $region12: #{tpu_custom_call.1} parent=5 // pred_fallthru
        _
      %p121 = scmp.lt.s32.totalorder %s14, 2
      // Predicated region
      $region17: #{tpu_custom_call.1} parent=5 // pred_check
        %p122 = pneg %p121
      $region18: #{tpu_custom_call.1} parent=5 // pred_check_branch
        %124 = sbr.rel (%p122) target = $region20
      $region19: #{tpu_custom_call.1} parent=5 // pred_region
        // Predicated region
        $region21: #{tpu_custom_call.1} parent=19 // pred_check
          %p125 = pneg %p69
        $region22: #{tpu_custom_call.1} parent=19 // pred_check_branch
          %127 = sbr.rel (%p125) target = $region24
        $region23: #{tpu_custom_call.1} parent=19 // pred_region
          %s128 = sand.u32 %s59, 1
          %s129 = scalar_lea.sflag [#allocation3], %s128
          %s130 = sand.u32 %s59, 1
          %s131 = smul.addr %s130, 8
          %s132 = scalar_lea.vmem [#allocation2], %s131
          %134 = vsyncadd %s129, 0
          %s135 = smul.addr %s21, 2
          %s136 = sadd.s32 %s22, %s135
          %s137 = smul.addr %s136, 8
          %s138 = scalar_lea.hbm %s1, %s137
          %s140 = sshll.u32 %s138, 4
          %s141 = int_to_ptr.hbm [resolvable:$true] %s140
          %s142 = sshll.u32 %s132, 4
          %s143 = int_to_ptr.vmem [resolvable:$true] %s142
          %145 = dma.hbm_to_vmem [thread:$0]  %s141, 128, %s143, %s129
        $region24: #{tpu_custom_call.1} parent=19 // pred_fallthru
          _
      $region20: #{tpu_custom_call.1} parent=5 // pred_fallthru
        _
      %p146 = scmp.le.s32.totalorder 1, %s14
      %p147 = scmp.lt.s32.totalorder %s14, 3
      %p148 = pnand %p146, %p147
      %p149 = pneg %p148
      // Predicated region
      $region25: #{tpu_custom_call.1} parent=5 // pred_check
        _
      $region26: #{tpu_custom_call.1} parent=5 // pred_check_branch
        %151 = sbr.rel (%p148) target = $region28
      $region27: #{tpu_custom_call.1} parent=5 // pred_region
        %s152 = ssub.s32 %s14, 1
        %s153 = sand.u32 %s62, 1
        %s154 = scalar_lea.sflag [#allocation3], %s153
        %s155 = sand.u32 %s62, 1
        %s156 = smul.addr %s155, 8
        %s157 = scalar_lea.vmem [#allocation2], %s156
        // Predicated region
        $region29: #{tpu_custom_call.1} parent=27 // pred_check
          %p158 = pneg %p75
        $region30: #{tpu_custom_call.1} parent=27 // pred_check_branch
          %160 = sbr.rel (%p158) target = $region32
        $region31: #{tpu_custom_call.1} parent=27 // pred_region
          %162 = dma.done %s154, 128
        $region32: #{tpu_custom_call.1} parent=27 // pred_fallthru
          _
        %p163 = pneg %p47
        %p164 = pneg %p44
        %s165 = sand.u32 %s62, 1
        %s166 = scalar_lea.sflag [#allocation3], %s165
        %s167 = sand.u32 %s62, 1
        %s168 = smul.addr %s167, 8
        %s169 = scalar_lea.vmem [#allocation2], %s168
        %p170 = pneg %p75
        %p171 = pneg %p72
        %p172 = pneg %p103
        %p173 = pneg %p100
        %s174 = sand.u32 %s90, 1
        %s175 = scalar_lea.sflag [#allocation4], %s174
        %s176 = sand.u32 %s90, 1
        %s177 = smul.addr %s176, 8
        %s178 = scalar_lea.vmem [#allocation5], %s177
        %v179 = vld [vmem:[%s0] sm:$0xff]
        %v180 = vld [vmem:[%s157] sm:$0xff]
        %182 = vset.pattern.permute.xlu0 0
        %183 = vperm.xlu0 %182, %v179
        %v184 = vpop.permute.xlu0 %183
        %v186 = vmul.f32 %v180, %v184
        %v187 = vmul.f32 %v186, %v184
        %188 = vst [vmem:[%s178] sm:$0xff] %v187
        %s189 = sand.u32 %s90, 1
        %s190 = scalar_lea.sflag [#allocation4], %s189
        %s191 = sand.u32 %s90, 1
        %s192 = smul.addr %s191, 8
        %s193 = scalar_lea.vmem [#allocation5], %s192
        // Predicated region
        $region33: #{tpu_custom_call.1} parent=27 // pred_check
          %p194 = pneg %p100
        $region34: #{tpu_custom_call.1} parent=27 // pred_check_branch
          %196 = sbr.rel (%p194) target = $region36
        $region35: #{tpu_custom_call.1} parent=27 // pred_region
          %198 = vsyncadd %s190, 0
          %s199 = smul.addr %s23, 2
          %s200 = sadd.s32 %s24, %s199
          %s201 = smul.addr %s200, 8
          %s202 = scalar_lea.hbm %s2, %s201
          %s204 = sshll.u32 %s193, 4
          %s205 = int_to_ptr.vmem [resolvable:$true] %s204
          %s206 = sshll.u32 %s202, 4
          %s207 = int_to_ptr.hbm [resolvable:$true] %s206
          %209 = dma.vmem_to_hbm [thread:$0]  %s205, 128, %s207, %s190
        $region36: #{tpu_custom_call.1} parent=27 // pred_fallthru
          _
      $region28: #{tpu_custom_call.1} parent=5 // pred_fallthru
        _
      %p210 = scmp.le.s32.totalorder 2, %s14
      // Predicated region
      $region37: #{tpu_custom_call.1} parent=5 // pred_check
        %p211 = pneg %p210
      $region38: #{tpu_custom_call.1} parent=5 // pred_check_branch
        %213 = sbr.rel (%p211) target = $region40
      $region39: #{tpu_custom_call.1} parent=5 // pred_region
        %s214 = ssub.s32 %s14, 2
        // Predicated region
        $region41: #{tpu_custom_call.1} parent=39 // pred_check
          %p215 = pneg %p106
        $region42: #{tpu_custom_call.1} parent=39 // pred_check_branch
          %217 = sbr.rel (%p215) target = $region44
        $region43: #{tpu_custom_call.1} parent=39 // pred_region
          %s218 = sand.u32 %s91, 1
          %s219 = scalar_lea.sflag [#allocation4], %s218
          %s220 = sand.u32 %s91, 1
          %s221 = smul.addr %s220, 8
          %s222 = scalar_lea.vmem [#allocation5], %s221
          %224 = dma.done %s219, 128
        $region44: #{tpu_custom_call.1} parent=39 // pred_fallthru
          _
      $region40: #{tpu_custom_call.1} parent=5 // pred_fallthru
        _
    $region6: #{tpu_custom_call.1} parent=1 // loop_footer
      %s18 = sadd.s32 1, %s14
    $region7: #{tpu_custom_call.1} parent=1 // loop_footer_branch
      %13 = sbr.rel target = $region3
    $region8: #{tpu_custom_call.1} parent=1 // loop_exit
      _
    %225 = vsyncpa [#allocation3], 1
    %s226 = scalar_lea.sflag [#allocation3], 1
    %227 = vsyncpa %s226, 1
    %228 = vsyncpa [#allocation4], 1
    %s229 = scalar_lea.sflag [#allocation4], 1
    %230 = vsyncpa %s229, 1

</llo_original>
